<compile_context>
chip_gen: v5e
topology: v5e:2x2
jax: 0.10.0
libtpu: 0.0.40
codegen_flags: <defaults>
</compile_context>

<pallas_src>
import jax
import jax.numpy as jnp
from jax.experimental import pallas as pl
from jax.experimental.pallas import tpu as pltpu


def _attention_kernel(x_ref, wt_ref, b_ref, q_ref, o_ref):
    # x_ref : (TB, T, H)  TB batch elements per grid step
    # wt_ref: (H, Q)      pre-transposed Linear weight
    # b_ref : (1, Q)      Linear bias
    # q_ref : (1, Q)      query vector
    # o_ref : (TB, H)     output rows for this batch tile (lane/sublane dense)
    TB, T, H = x_ref.shape

    x = x_ref[...]                                        # (TB, T, H)
    wt = wt_ref[...]                                      # (H, Q)
    b = b_ref[...]                                        # (1, Q)
    q = q_ref[...]                                        # (1, Q)

    # Fused key projection: one (TB*T, H) @ (H, Q) matmul on the MXU.
    x2d = x.reshape(TB * T, H)
    key = jnp.tanh(
        jnp.dot(x2d, wt, preferred_element_type=jnp.float32) + b
    )                                                     # (TB*T, Q)

    # Attention logits: key . query per row, grouped back per batch element.
    logits = jnp.sum(key * q, axis=-1, keepdims=True)     # (TB*T, 1)
    logits = logits.reshape(TB, T, 1)                     # (TB, T, 1)

    # Softmax over the time axis (PyTorch dim=1), max-subtracted for stability.
    m = jnp.max(logits, axis=1, keepdims=True)            # (TB, 1, 1)
    e = jnp.exp(logits - m)                               # (TB, T, 1)
    denom = jnp.sum(e, axis=1, keepdims=True)             # (TB, 1, 1)
    att = e * pl.reciprocal(denom, approx=True)           # (TB, T, 1)

    # Weighted sum over time: att_out[b, h] = sum_t att[b, t] * x[b, t, h].
    out = jnp.sum(x * att, axis=1)                        # (TB, H)
    o_ref[...] = out.astype(o_ref.dtype)


def _pick_batch_tile(B):
    """Largest batch tile: whole batch for small B, else a multiple of 8 that
    divides B (keeps the (8, 128) sublane rule on the (TB, H) output block)."""
    if B <= 64:
        return B
    for tb in (64, 32, 16, 8):
        if B % tb == 0:
            return tb
    return B  # fall back to a single grid step covering the whole batch


def attention_forward(x, w, b, qvec):
    """x: (B, T, H); w: (Q, H) [PyTorch Linear layout]; b: (Q,); qvec: (1, Q).

    Returns (B, H). This matches PyTorch's .squeeze() for B >= 2; for B == 1
    PyTorch would return (H,) -- reshape(-1) the result if that exact shape matters.
    """
    B, T, H = x.shape
    Q = w.shape[0]

    w_t = jnp.transpose(w)          # (H, Q): one-time transpose, outside the kernel
    b2 = b.reshape(1, Q)

    TB = _pick_batch_tile(B)
    grid = (B // TB,)

    out = pl.pallas_call(
        _attention_kernel,
        out_shape=jax.ShapeDtypeStruct((B, H), x.dtype),
        grid_spec=pltpu.PrefetchScalarGridSpec(
            num_scalar_prefetch=0,
            grid=grid,
            in_specs=[
                pl.BlockSpec((TB, T, H), lambda i: (i, 0, 0)),   # x: TB batches/step
                pl.BlockSpec((H, Q), lambda i: (0, 0)),          # pre-transposed weight
                pl.BlockSpec((1, Q), lambda i: (0, 0)),          # bias
                pl.BlockSpec((1, Q), lambda i: (0, 0)),          # query vec
            ],
            out_specs=pl.BlockSpec((TB, H), lambda i: (i, 0)),   # 2-D, lane-dense output
        ),
        compiler_params=pltpu.CompilerParams(
            dimension_semantics=("parallel",),
        ),
    )(x, w_t, b2, qvec)
    return out


def attention_reference(x, w, b, qvec):
    """Pure-JAX reference matching the PyTorch forward exactly."""
    key = jnp.tanh(jnp.einsum("bth,qh->btq", x, w) + b)          # (B, T, Q)
    logits = jnp.einsum("btq,q->bt", key, qvec[0])               # (B, T)
    att = jax.nn.softmax(logits, axis=1)                         # softmax over time
    out = jnp.einsum("bth,bt->bh", x, att)                       # (B, H)
    return out


if __name__ == "__main__":
    # Small shapes consistent with the module: (batch, time_step, h_dim), query_dim
    B, T, H, Q = 2, 8, 32, 16

    key0 = jax.random.PRNGKey(0)
    k_x, k_w, k_b, k_q = jax.random.split(key0, 4)

    x = jax.random.normal(k_x, (B, T, H), dtype=jnp.float32)
    # Deterministic parameter init (synthetic; mirrors nn.Linear(H, Q) + Parameter(rand(1, Q)))
    w = jax.random.normal(k_w, (Q, H), dtype=jnp.float32) * 0.1   # Linear weight (Q, H)
    b = jax.random.normal(k_b, (Q,), dtype=jnp.float32) * 0.1     # Linear bias
    qvec = jax.random.uniform(k_q, (1, Q), dtype=jnp.float32)     # query_vec ~ rand(1, Q)

    out = attention_forward(x, w, b, qvec)
    out = jax.block_until_ready(out)

    ref = attention_reference(x, w, b, qvec)
    assert out.shape == (B, H), out.shape
    # Tolerance loosened slightly vs the exact-reciprocal version because the
    # softmax denominator uses the EUP approximate reciprocal (~1e-3 rel err).
    assert jnp.allclose(out, ref, atol=2e-3, rtol=2e-3), (
        f"max abs err {jnp.max(jnp.abs(out - ref))}"
    )

    print("KERNEL_OK")
</pallas_src>

<mosaic_0001>
module attributes {stable_mosaic.version = 11 : i64} {
  func.func @_attention_kernel(%arg0: i32, %arg1: memref<2x8x32xf32, #tpu.memory_space<vmem>>, %arg2: memref<32x16xf32, #tpu.memory_space<vmem>>, %arg3: memref<1x16xf32, #tpu.memory_space<vmem>>, %arg4: memref<1x16xf32, #tpu.memory_space<vmem>>, %arg5: memref<2x32xf32, #tpu.memory_space<vmem>>) attributes {dimension_semantics = [#tpu.dimension_semantics<parallel>], iteration_bounds = array<i64: 1>, scalar_prefetch = 0 : i64, scratch_operands = 0 : i64, tpu.core_type = #tpu.core_type<tc>, window_params = [{transform_indices = @transform_0, window_bounds = array<i64: 2, 8, 32>}, {pipeline_mode = #tpu.pipeline_mode<synchronous>, transform_indices = @transform_1, window_bounds = array<i64: 32, 16>}, {pipeline_mode = #tpu.pipeline_mode<synchronous>, transform_indices = @transform_2, window_bounds = array<i64: 1, 16>}, {pipeline_mode = #tpu.pipeline_mode<synchronous>, transform_indices = @transform_3, window_bounds = array<i64: 1, 16>}, {transform_indices = @transform_4, window_bounds = array<i64: 2, 32>}]} {
    %c0 = arith.constant 0 : index
    %c0_0 = arith.constant 0 : index
    %c0_1 = arith.constant 0 : index
    %0 = vector.load %arg1[%c0, %c0_0, %c0_1] : memref<2x8x32xf32, #tpu.memory_space<vmem>>, vector<2x8x32xf32>
    %c0_2 = arith.constant 0 : index
    %c0_3 = arith.constant 0 : index
    %1 = vector.load %arg2[%c0_2, %c0_3] : memref<32x16xf32, #tpu.memory_space<vmem>>, vector<32x16xf32>
    %c0_4 = arith.constant 0 : index
    %c0_5 = arith.constant 0 : index
    %2 = vector.load %arg3[%c0_4, %c0_5] : memref<1x16xf32, #tpu.memory_space<vmem>>, vector<1x16xf32>
    %c0_6 = arith.constant 0 : index
    %c0_7 = arith.constant 0 : index
    %3 = vector.load %arg4[%c0_6, %c0_7] : memref<1x16xf32, #tpu.memory_space<vmem>>, vector<1x16xf32>
    %4 = vector.shape_cast %0 : vector<2x8x32xf32> to vector<16x32xf32>
    %cst = arith.constant dense<0.000000e+00> : vector<16x16xf32>
    %5 = tpu.matmul %4, %1, %cst {dimension_numbers = #tpu.dot_dimension_numbers<[1], [0], [0], [1], [0, 0, 1, 1], [], []>} : vector<16x32xf32>, vector<32x16xf32>, vector<16x16xf32> -> vector<16x16xf32>
    %6 = vector.broadcast %2 : vector<1x16xf32> to vector<16x16xf32>
    %7 = arith.addf %5, %6 : vector<16x16xf32>
    %8 = math.tanh %7 : vector<16x16xf32>
    %9 = vector.broadcast %3 : vector<1x16xf32> to vector<16x16xf32>
    %10 = arith.mulf %8, %9 : vector<16x16xf32>
    %cst_8 = arith.constant dense<0.000000e+00> : vector<16xf32>
    %11 = vector.multi_reduction <add>, %10, %cst_8 [1] : vector<16x16xf32> to vector<16xf32>
    %12 = vector.shape_cast %11 : vector<16xf32> to vector<16x1xf32>
    %13 = vector.shape_cast %12 : vector<16x1xf32> to vector<2x8x1xf32>
    %cst_9 = arith.constant dense<0xFF800000> : vector<2x1xf32>
    %14 = vector.multi_reduction <maximumf>, %13, %cst_9 [1] : vector<2x8x1xf32> to vector<2x1xf32>
    %15 = vector.shape_cast %14 : vector<2x1xf32> to vector<2x1x1xf32>
    %16 = vector.broadcast %15 : vector<2x1x1xf32> to vector<2x8x1xf32>
    %17 = arith.subf %13, %16 : vector<2x8x1xf32>
    %18 = math.exp %17 : vector<2x8x1xf32>
    %cst_10 = arith.constant dense<0.000000e+00> : vector<2x1xf32>
    %19 = vector.multi_reduction <add>, %18, %cst_10 [1] : vector<2x8x1xf32> to vector<2x1xf32>
    %20 = vector.shape_cast %19 : vector<2x1xf32> to vector<2x1x1xf32>
    %21 = tpu.reciprocal %20 {approx = true} : vector<2x1x1xf32> -> vector<2x1x1xf32>
    %22 = vector.broadcast %21 : vector<2x1x1xf32> to vector<2x8x1xf32>
    %23 = arith.mulf %18, %22 : vector<2x8x1xf32>
    %24 = vector.broadcast %23 : vector<2x8x1xf32> to vector<2x8x32xf32>
    %25 = arith.mulf %0, %24 : vector<2x8x32xf32>
    %cst_11 = arith.constant dense<0.000000e+00> : vector<2x32xf32>
    %26 = vector.multi_reduction <add>, %25, %cst_11 [1] : vector<2x8x32xf32> to vector<2x32xf32>
    %c0_12 = arith.constant 0 : index
    %c0_13 = arith.constant 0 : index
    %27 = vector.load %arg5[%c0_12, %c0_13] : memref<2x32xf32, #tpu.memory_space<vmem>>, vector<2x32xf32>
    tpu.vector_store %arg5[%c0_12, %c0_13], %26 {strides = array<i32>} : memref<2x32xf32, #tpu.memory_space<vmem>>, vector<2x32xf32>,
    return
  }
  func.func @transform_0(%arg0: i32) -> (i32, i32, i32) {
    %c0_i32 = arith.constant 0 : i32
    %c0_i32_0 = arith.constant 0 : i32
    %c0_i32_1 = arith.constant 0 : i32
    return %arg0, %c0_i32, %c0_i32_0 : i32, i32, i32
  }
  func.func @transform_1(%arg0: i32) -> (i32, i32) {
    %c0_i32 = arith.constant 0 : i32
    %c0_i32_0 = arith.constant 0 : i32
    %c0_i32_1 = arith.constant 0 : i32
    return %c0_i32, %c0_i32_0 : i32, i32
  }
  func.func @transform_2(%arg0: i32) -> (i32, i32) {
    %c0_i32 = arith.constant 0 : i32
    %c0_i32_0 = arith.constant 0 : i32
    %c0_i32_1 = arith.constant 0 : i32
    return %c0_i32, %c0_i32_0 : i32, i32
  }
  func.func @transform_3(%arg0: i32) -> (i32, i32) {
    %c0_i32 = arith.constant 0 : i32
    %c0_i32_0 = arith.constant 0 : i32
    %c0_i32_1 = arith.constant 0 : i32
    return %c0_i32, %c0_i32_0 : i32, i32
  }
  func.func @transform_4(%arg0: i32) -> (i32, i32) {
    %c0_i32 = arith.constant 0 : i32
    %c0_i32_0 = arith.constant 0 : i32
    return %arg0, %c0_i32 : i32, i32
  }
}

</mosaic_0001>

<llo_original>
// kernel: tpu_custom_call.1
$region0: #{tpu_custom_call.1}
  #allocation0 [shape = 'u32[]', space=smem, size = 0x4, offset = 0x4, fixed_abs, tag = 'smem constant byte address 0x4 - core index']
  #allocation1 [shape = 'u32[72,128]{1,0:T(1,128)}', space=vmem, size = 0x9000, scoped, tag = 'internal scratch']
  %s0 = inlined_call_operand.vmem [shape: f32[2,8,32], index: 0, kind: input, shape index: {}]
  %s1 = inlined_call_operand.vmem [shape: f32[32,16], index: 1, kind: input, shape index: {}]
  %s2 = inlined_call_operand.vmem [shape: f32[1,16], index: 2, kind: input, shape index: {}]
  %s3 = inlined_call_operand.vmem [shape: f32[1,16], index: 3, kind: input, shape index: {}]
  %s4 = inlined_call_operand.hbm [shape: f32[2,32], index: 4, kind: output, shape index: {}]
  %s5 = sld [smem:[#allocation0]]
  $region26: #{tpu_custom_call.1} parent=0
    _
  %s7 = ssub.s32 1, %s5
  %s8 = scalar_select 0, %s7, %s5
  $region1: #{tpu_custom_call.1} parent=0
    #allocation2 [shape = 'u8[1024]{0}', space=vmem, size = 0x400, scoped, tag = 'output window, operand 0, single buffered']
    #allocation3 [shape = 's32[1]{0}', space=sflag, size = 0x4, scoped, tag = 'scoped memory for tpu_custom_call.1']
    %9 = vsyncpa [#allocation3], 0
    // Predicated region
    $region2: #{tpu_custom_call.1} parent=1 // pred_check
      _
    $region3: #{tpu_custom_call.1} parent=1 // pred_check_branch
      %11 = sbr.rel (0) target = $region5
    $region4: #{tpu_custom_call.1} parent=1 // pred_region
      _
    $region5: #{tpu_custom_call.1} parent=1 // pred_fallthru
      _
    // Predicated region
    $region6: #{tpu_custom_call.1} parent=1 // pred_check
      _
    $region7: #{tpu_custom_call.1} parent=1 // pred_check_branch
      %13 = sbr.rel (0) target = $region9
    $region8: #{tpu_custom_call.1} parent=1 // pred_region
      _
    $region9: #{tpu_custom_call.1} parent=1 // pred_fallthru
      _
    // Predicated region
    $region10: #{tpu_custom_call.1} parent=1 // pred_check
      _
    $region11: #{tpu_custom_call.1} parent=1 // pred_check_branch
      %15 = sbr.rel (0) target = $region13
    $region12: #{tpu_custom_call.1} parent=1 // pred_region
      _
    $region13: #{tpu_custom_call.1} parent=1 // pred_fallthru
      _
    // Predicated region
    $region14: #{tpu_custom_call.1} parent=1 // pred_check
      _
    $region15: #{tpu_custom_call.1} parent=1 // pred_check_branch
      %17 = sbr.rel (0) target = $region17
    $region16: #{tpu_custom_call.1} parent=1 // pred_region
      _
    $region17: #{tpu_custom_call.1} parent=1 // pred_fallthru
      _
    %v18 = vld [vmem:[%s0] sm:$0xff]
    %v19 = vld [vmem:[%s0 + $0x8] sm:$0xff]
    %v20 = vld [vmem:[%s1] sm:$0xff]
    %v21 = vld [vmem:[%s1 + $0x8] sm:$0xff]
    %v22 = vld [vmem:[%s1 + $0x10] sm:$0xff]
    %v23 = vld [vmem:[%s1 + $0x18] sm:$0xff]
    %v24 = vld [vmem:[%s2] sm:$0x1]
    %v25 = vld [vmem:[%s3] sm:$0x1]
    %v27 = vperm.slane %v24, 0
    %vm29 = vcmask 261120
    %v31 = vsel %vm29, %v18, 0
    %v34 = vsel %vm29, %v19, 0
    %36 = vmatpush.msra.mxu0 0.0
    %37 = vmatpush.msra.mxu0 0.0
    %38 = vmatpush.msra.mxu0 0.0
    %39 = vmatpush.msra.mxu0 0.0
    %40 = vmatpush.msra.mxu0 0.0
    %41 = vmatpush.msra.mxu0 0.0
    %42 = vmatpush.msra.mxu0 0.0
    %43 = vmatpush.msra.mxu0 0.0
    %44 = vmatpush.msra.mxu0 0.0
    %45 = vmatpush.msra.mxu0 0.0
    %46 = vmatpush.msra.mxu0 0.0
    %47 = vmatpush.msra.mxu0 0.0
    %48 = vmatpush.msra.mxu0 %v23
    %49 = vmatpush.msra.mxu0 %v22
    %50 = vmatpush.msra.mxu0 %v21
    %51 = vmatpush.msra.mxu0 %v20
    %52 = vmatmul.f32.gmra.mxu0 %v31
    %v53 = vpop.f32.mrf.mxu0
    %v54 = vadd.f32 %v27, %v53
    %55 = vmatmul.f32.gmra.mxu0 %v34
    %v56 = vpop.f32.mrf.mxu0
    %v57 = vadd.f32 %v27, %v56
    %58 = vdwg.mxu0
    %v59 = vtanh.pop %v54
    %v60 = vtanh.pop %v57
    %v62 = vperm.slane %v25, 0
    %v64 = vmul.f32 %v59, %v62
    %v65 = vmul.f32 %v60, %v62
    %vm66 = vcmask 130048
    %v67 = vsel %vm66, %v64, 0.0
    %68 = vadd.xlane.f32.xlu0 %v67
    %v69 = vpop.xlane.xlu0 %68
    %v70 = vsel %vm66, %v65, 0.0
    %71 = vadd.xlane.f32.xlu0 %v70
    %v72 = vpop.xlane.xlu0 %71
    %v73 = vrot.slane %v69, 4
    %v74 = vmax.f32 %v69, %v73
    %v75 = vrot.slane %v74, 2
    %v76 = vmax.f32 %v74, %v75
    %v77 = vrot.slane %v76, 1
    %v78 = vmax.f32 %v76, %v77
    %v79 = vrot.slane %v72, 4
    %v80 = vmax.f32 %v72, %v79
    %v81 = vrot.slane %v80, 2
    %v82 = vmax.f32 %v80, %v81
    %v83 = vrot.slane %v82, 1
    %v84 = vmax.f32 %v82, %v83
    %v85 = vsub.f32 %v69, %v78
    %v86 = vsub.f32 %v72, %v84
    %v87 = vmul.f32 %v85, 1.442695
    %v88 = vpow.pop %v87
    %v89 = vmul.f32 %v86, 1.442695
    %v90 = vpow.pop %v89
    %v91 = vrot.slane %v88, 4
    %v92 = vadd.f32 %v88, %v91
    %v93 = vrot.slane %v92, 2
    %v94 = vadd.f32 %v92, %v93
    %v95 = vrot.slane %v94, 1
    %v96 = vadd.f32 %v94, %v95
    %v97 = vrot.slane %v90, 4
    %v98 = vadd.f32 %v90, %v97
    %v99 = vrot.slane %v98, 2
    %v100 = vadd.f32 %v98, %v99
    %v101 = vrot.slane %v100, 1
    %v102 = vadd.f32 %v100, %v101
    %v103 = vrcp.pop %v96
    %v104 = vrcp.pop %v102
    %v105 = vmul.f32 %v88, %v103
    %v106 = vmul.f32 %v90, %v104
    %v107 = vmul.f32 %v18, %v105
    %v108 = vmul.f32 %v19, %v106
    %v109 = vsel %vm29, %v107, 0.0
    %v110 = vrot.slane %v109, 4
    %v111 = vadd.f32 %v109, %v110
    %v112 = vrot.slane %v111, 2
    %v113 = vadd.f32 %v111, %v112
    %v114 = vrot.slane %v113, 1
    %v115 = vadd.f32 %v113, %v114
    %v116 = vsel %vm29, %v108, 0.0
    %v117 = vrot.slane %v116, 4
    %v118 = vadd.f32 %v116, %v117
    %v119 = vrot.slane %v118, 2
    %v120 = vadd.f32 %v118, %v119
    %v121 = vrot.slane %v120, 1
    %v122 = vadd.f32 %v120, %v121
    %vm125 = vcmask 1041409
    %v126 = vsel %vm125, %v122, %v115
    %vm128 = vcmask 254976
    %129 = vst.msk [vmem:[#allocation2] sm:$0x3] %vm128, %v126
    // Predicated region
    $region18: #{tpu_custom_call.1} parent=1 // pred_check
      _
    $region19: #{tpu_custom_call.1} parent=1 // pred_check_branch
      %131 = sbr.rel (0) target = $region21
    $region20: #{tpu_custom_call.1} parent=1 // pred_region
      %133 = vsyncadd [#allocation3], 0
      %s135 = sshll.u32 [#allocation2], 4
      %s136 = int_to_ptr.vmem [resolvable:$true] %s135
      %s137 = sshll.u32 %s4, 4
      %s138 = int_to_ptr.hbm [resolvable:$true] %s137
      %140 = dma.vmem_to_hbm [thread:$0]  %s136, 32, %s138, [#allocation3]
    $region21: #{tpu_custom_call.1} parent=1 // pred_fallthru
      _
    // Predicated region
    $region22: #{tpu_custom_call.1} parent=1 // pred_check
      _
    $region23: #{tpu_custom_call.1} parent=1 // pred_check_branch
      %142 = sbr.rel (0) target = $region25
    $region24: #{tpu_custom_call.1} parent=1 // pred_region
      %144 = dma.done [#allocation3], 32
    $region25: #{tpu_custom_call.1} parent=1 // pred_fallthru
      _
    %145 = vsyncpa [#allocation3], 1

</llo_original>
